<compile_context>
chip_gen: v7x
topology: tpu7x:2x2x1
jax: 0.10.0
libtpu: 0.0.40
codegen_flags: <defaults>
</compile_context>

<pallas_src>
from functools import partial

import numpy as np
import jax
import jax.numpy as jnp
from jax import lax
from jax.experimental import pallas as pl
from jax.experimental.pallas import tpu as pltpu

ORACLE_PENALTY = 1.0
WRITE_RIGHT = True
DELTA_CONTROL = False


def _round_up(x, m):
    return ((x + m - 1) // m) * m


# ----------------------------- Pallas kernel --------------------------------

def _controls_gamma_kernel(obs_ref, w_ref, rel_ref, b_ref, ctrl_ref, gamma_ref):
    """Fused gate + log-sigmoid controls + gamma step function.

    obs_ref  : (TR, 128)  f32/bf16  each row packs P = 128//C tokens x C channels
    w_ref    : (128, 2P)  f32/bf16  block-diagonal gate weight, columns duplicated
    rel_ref  : (TR, P)    i32       j - best_context[b, t] per token
    b_ref    : (1, 1)     f32       gate bias (SMEM, scalar path)
    ctrl_ref : (TR, 2P)   f32       interleaved [log(rho), log(1-rho)] per token
    gamma_ref: (TR, P)    f32       step function 1[j >= best]
    """
    # (TR,128) x (128,2P): real M dim, full K; duplicated weight columns give the
    # per-token logit already interleaved as [x, x].
    xx = jnp.dot(obs_ref[...], w_ref[...], preferred_element_type=jnp.float32)
    xx = xx + b_ref[0, 0]
    # numerically stable log-sigmoid
    s = jnp.minimum(xx, 0.0) - jnp.log1p(jnp.exp(-jnp.abs(xx)))
    # even lanes: log(rho) = s ; odd lanes: log(1-rho) = s - x.
    # Constant (1, 2P) parity mask + where (no 0*x term, so x = +-inf stays finite
    # on the log(rho) lanes).
    odd = (lax.broadcasted_iota(jnp.int32, (1, ctrl_ref.shape[1]), 1) & 1) == 1
    ctrl_ref[...] = jnp.where(odd, s - xx, s)
    # gamma[b, t, j] = 1.0 iff j >= best_context[b, t]
    gamma_ref[...] = (rel_ref[...] >= 0).astype(jnp.float32)


def controls_and_gamma(observations, w, b, best_context, *, tile_tokens=16384):
    """Fused Pallas call. Returns (controls (B,Tt,Ts,2), gamma (B,Tt,Ts))."""
    B, Tt, Ts, C = observations.shape
    # TODO(synk): general controller_dim needs channel padding; demo uses C=32.
    assert C <= 128 and 128 % C == 0, "packed layout needs 128 % C == 0"
    P = 128 // C
    N = B * Tt * Ts

    feed_dtype = observations.dtype
    if feed_dtype not in (jnp.bfloat16, jnp.float32):
        feed_dtype = jnp.float32

    # Token-major packing; the reshape is free (row-major, no data movement).
    n_pad = _round_up(N, P)
    obs2 = observations.reshape(N, C).astype(feed_dtype)
    if n_pad != N:                                   # rare ragged-tail fallback only
        obs2 = jnp.pad(obs2, ((0, n_pad - N), (0, 0)))
    rows = n_pad // P
    obs_packed = obs2.reshape(rows, 128)

    # Block-diagonal gate weight with duplicated columns:
    #   Wbd[p*C + c, 2p] = Wbd[p*C + c, 2p + 1] = w[c]
    blk = jnp.kron(jnp.eye(P, dtype=feed_dtype), w.reshape(C, 1).astype(feed_dtype))
    w_bd = jnp.repeat(blk, 2, axis=1)                # (128, 2P)
    b2 = b.reshape(1, 1).astype(jnp.float32)

    # Per-token (j - best[b, t]); >= 0  <=>  gamma == 1.
    # TODO(synk): ship as int8 (Ts <= 127) or via scalar-prefetched best_context
    # (tile-periodic j iota) to shave the remaining ~6% of HBM traffic.
    j_idx = jnp.tile(jnp.arange(Ts, dtype=jnp.int32), B * Tt)
    bt_best = jnp.repeat(best_context.reshape(-1).astype(jnp.int32), Ts)
    rel = j_idx - bt_best
    if n_pad != N:
        rel = jnp.pad(rel, (0, n_pad - N), constant_values=-1)
    rel = rel.reshape(rows, P)

    # Biggest tile that amortizes the ~0.35us/step overhead; clamp to the array.
    tr = min(_round_up(max(tile_tokens // P, 8), 8), _round_up(rows, 8))
    grid = (pl.cdiv(rows, tr),)

    # obs/rel/ctrl/gamma blocks lane-pad to 128 in VMEM => ~4 KiB per packed row,
    # double buffered.  Budget explicitly: above v5e's 16 MiB default scoped limit,
    # well below v7x's 64 MiB physical per-core VMEM for the default tile.
    vmem_limit = int(min(max(4 * tr * 1024 + (8 << 20), 24 << 20), 96 << 20))

    ctrl, gamma_flat = pl.pallas_call(
        _controls_gamma_kernel,
        out_shape=(
            jax.ShapeDtypeStruct((rows, 2 * P), jnp.float32),
            jax.ShapeDtypeStruct((rows, P), jnp.float32),
        ),
        grid=grid,
        in_specs=[
            pl.BlockSpec((tr, 128), lambda i: (i, 0)),          # packed observations
            pl.BlockSpec((128, 2 * P), lambda i: (0, 0)),       # weight, reused
            pl.BlockSpec((tr, P), lambda i: (i, 0)),            # rel
            pl.BlockSpec(memory_space=pltpu.MemorySpace.SMEM),  # bias: scalar path
        ],
        out_specs=(
            pl.BlockSpec((tr, 2 * P), lambda i: (i, 0)),
            pl.BlockSpec((tr, P), lambda i: (i, 0)),
        ),
        compiler_params=pltpu.CompilerParams(
            # TODO(synk): on v7x add a leading CORE_PARALLEL grid axis (or
            # pl.core_map over create_tensorcore_mesh) to split tiles across both
            # TensorCores; plain "parallel" is a codegen no-op there.
            dimension_semantics=("parallel",),
            vmem_limit_bytes=vmem_limit,
        ),
        cost_estimate=pl.CostEstimate(
            flops=2 * N * C,
            transcendentals=2 * N,
            bytes_accessed=N * (C * np.dtype(feed_dtype).itemsize + 4 + 8 + 4),
        ),
    )(obs_packed, w_bd, rel, b2)

    # Free reshapes back to the module's natural layouts (no transpose / stack pass).
    controls = ctrl.reshape(n_pad, 2)[:N].reshape(B, Tt, Ts, 2)
    gamma = gamma_flat.reshape(n_pad)[:N].reshape(B, Tt, Ts)
    return controls, gamma


# ------------------------ oracle DP (vectorized XLA) -------------------------
# The per-t row recurrence fs[t,j] = min(fs[t-1,j]+s[t-1,j], fs[t,j-1]+c_j) is a
# (min,+) prefix: with C_j = sum_{m<=j} c_m,  fs[t,:] = C + cummin(base - C),
# base = [fs[t,0], fs[t-1,1:]+s[t-1,1:]].  Same (reversed) for the backward DP.
# TODO(synk): the greedy path walk is a data-dependent recurrence; kept as a
# lax.while_loop (no Pallas win).

def _oracle_best_context(scores, penalty):
    B, Tt, Ts = scores.shape
    s = -scores.astype(jnp.float32)

    # ---- forward DP ----
    fs = jnp.zeros((B, Tt + 1, Ts), jnp.float32)
    fs = fs.at[:, 1:, 0].set(jnp.cumsum(s[:, :, 0], axis=-1))
    row0 = penalty * jnp.cumsum(jnp.arange(1, Ts + 1, dtype=jnp.float32)) / Ts
    fs = fs.at[:, 0, :].set(jnp.broadcast_to(row0, (B, Ts)))

    c_fwd = penalty * jnp.arange(2, Ts + 1, dtype=jnp.float32) / Ts      # j = 1..Ts-1
    C_fwd = jnp.concatenate([jnp.zeros((1,), jnp.float32), jnp.cumsum(c_fwd)])

    def fwd_t(t, fs):
        write = fs[:, t - 1, :] + s[:, t - 1, :]                         # (B, Ts)
        base = jnp.concatenate([fs[:, t, 0:1], write[:, 1:]], axis=-1)
        row = C_fwd[None, :] + lax.cummin(base - C_fwd[None, :], axis=1)
        return fs.at[:, t, :].set(row)

    fs = lax.fori_loop(1, Tt + 1, fwd_t, fs)

    # ---- backward DP ----
    bs = jnp.zeros((B, Tt + 1, Ts), jnp.float32)
    bs = bs.at[:, :-1, -1].set(jnp.flip(jnp.cumsum(s[:, :, -1], axis=-1), axis=-1))
    last_row = penalty * jnp.flip(jnp.arange(1, Ts + 1, dtype=jnp.float32)) / Ts
    bs = bs.at[:, -1, :].set(jnp.broadcast_to(last_row, (B, Ts)))

    c_bwd = penalty * jnp.arange(1, Ts, dtype=jnp.float32) / Ts          # j = 0..Ts-2
    D_bwd = jnp.concatenate([jnp.zeros((1,), jnp.float32), jnp.cumsum(c_bwd)])

    def bwd_t(tt, bs):
        t = Tt - 1 - tt
        write = bs[:, t + 1, :] + s[:, t, :]                             # (B, Ts)
        base = jnp.concatenate([write[:, :-1], bs[:, t, Ts - 1:Ts]], axis=-1)
        row = lax.cummin(base + D_bwd[None, :], axis=1, reverse=True) - D_bwd[None, :]
        return bs.at[:, t, :].set(row)

    bs = lax.fori_loop(0, Tt, bwd_t, bs)

    cs = fs + bs

    # greedy path extraction (per batch), identical to the torch while loop
    def extract(cs_b):
        def cond(state):
            t, j, _ = state
            return jnp.logical_and(t < Tt, j < Ts - 1)

        def body(state):
            t, j, best = state
            take_write = cs_b[t + 1, j] <= cs_b[t, j + 1]
            best = best.at[t].set(jnp.where(take_write, j, best[t]))
            t = jnp.where(take_write, t + 1, t)
            j = jnp.where(take_write, j, j + 1)
            return t, j, best

        init = (jnp.int32(0), jnp.int32(0),
                jnp.full((Tt,), Ts - 1, dtype=jnp.int32))
        _, _, best = lax.while_loop(cond, body, init)
        return best

    return jax.vmap(extract)(cs)


# ------------------------------- forward ------------------------------------

@partial(jax.jit, static_argnames=("penalty", "write_right", "delta_control"))
def fb_controls_forward(observations, scores, w, b, *,
                        penalty=ORACLE_PENALTY,
                        write_right=WRITE_RIGHT,
                        delta_control=DELTA_CONTROL):
    assert write_right and not delta_control, "only this flag branch implemented"
    B, Tt, Ts = scores.shape
    best_context = _oracle_best_context(scores, penalty)          # (B, Tt) int32
    controls, gamma = controls_and_gamma(observations, w, b, best_context)
    AP = (best_context + 1).astype(jnp.float32).mean(axis=1) / Ts
    write = gamma[:, 1:]                  # derived as cheap XLA slices of gamma
    read = 1.0 - write
    return controls[:, :-1], gamma, read, write, AP, best_context, controls


# ----------------------- numpy reference (for checks) ------------------------

def _oracle_best_context_ref_np(scores, penalty):
    scores = np.asarray(scores, dtype=np.float32)
    B, Tt, Ts = scores.shape
    s = -scores
    fs = np.zeros((B, Tt + 1, Ts), np.float32)
    fs[:, 1:, 0] = np.cumsum(s[:, :, 0], axis=-1)
    fs[:, 0, :] = penalty * np.cumsum(np.arange(1, Ts + 1, dtype=np.float32)) / Ts
    for t in range(1, Tt + 1):
        for j in range(1, Ts):
            ifwrite = fs[:, t - 1, j] + s[:, t - 1, j]
            ifread = fs[:, t, j - 1] + penalty * (j + 1) / Ts
            fs[:, t, j] = np.minimum(ifwrite, ifread)
    bs = np.zeros((B, Tt + 1, Ts), np.float32)
    bs[:, :-1, -1] = np.flip(np.cumsum(s[:, :, -1], axis=-1), axis=-1)
    bs[:, -1, :] = penalty * np.flip(np.arange(1, Ts + 1, dtype=np.float32)) / Ts
    for t in range(Tt - 1, -1, -1):
        for j in range(Ts - 2, -1, -1):
            ifwrite = bs[:, t + 1, j] + s[:, t, j]
            ifread = bs[:, t, j + 1] + penalty * (j + 1) / Ts
            bs[:, t, j] = np.minimum(ifwrite, ifread)
    cs = fs + bs
    best_context = []
    for b in range(B):
        t, j, best = 0, 0, []
        while t < Tt and j < Ts - 1:
            if cs[b, t + 1, j] <= cs[b, t, j + 1]:
                best.append(j)
                t += 1
            else:
                j += 1
        while len(best) < Tt:
            best.append(Ts - 1)
        best_context.append(best)
    return np.array(best_context, dtype=np.int32)


# --------------------------------- main --------------------------------------

if __name__ == "__main__":
    B, Tt, Ts, C = 2, 6, 8, 32

    key = jax.random.PRNGKey(0)
    k_obs, k_sc, k_w = jax.random.split(key, 3)
    observations = jax.random.normal(k_obs, (B, Tt, Ts, C), dtype=jnp.float32)
    scores = jax.random.normal(k_sc, (B, Tt, Ts), dtype=jnp.float32)

    # gate params: nn.Linear(C, 1), weight ~ N(0, 1/C), bias = 0
    gate_w = (1.0 / C) * jax.random.normal(k_w, (C,), dtype=jnp.float32)
    gate_b = jnp.zeros((1,), dtype=jnp.float32)

    controls_out, gamma, read, write, AP, best_context, controls_full = \
        fb_controls_forward(observations, scores, gate_w, gate_b)
    jax.block_until_ready((controls_out, gamma, read, write, AP))

    # matches torch print of average proportion
    print('AP:', ' '.join('{:.2f}'.format(v) for v in np.asarray(AP).tolist()))

    # ----- sanity checks against plain-JAX / numpy references -----
    x_ref = observations.reshape(-1, C) @ gate_w.reshape(C, 1) + gate_b
    s_ref = jax.nn.log_sigmoid(x_ref)
    controls_ref = jnp.concatenate([s_ref, s_ref - x_ref], axis=-1).reshape(B, Tt, Ts, 2)
    assert np.allclose(np.asarray(controls_full), np.asarray(controls_ref),
                       atol=1e-4, rtol=1e-4), "controls mismatch"

    best_ref = _oracle_best_context_ref_np(scores, ORACLE_PENALTY)
    assert np.array_equal(np.asarray(best_context), best_ref), "best_context mismatch"

    gamma_ref = jnp.cumsum(jax.nn.one_hot(best_context, Ts, dtype=jnp.float32), axis=-1)
    assert np.allclose(np.asarray(gamma), np.asarray(gamma_ref)), "gamma mismatch"
    assert np.allclose(np.asarray(write), np.asarray(gamma_ref[:, 1:])), "write mismatch"
    assert np.allclose(np.asarray(read), 1.0 - np.asarray(gamma_ref[:, 1:])), "read mismatch"

    assert controls_out.shape == (B, Tt - 1, Ts, 2)
    assert gamma.shape == (B, Tt, Ts)
    assert read.shape == (B, Tt - 1, Ts) and write.shape == (B, Tt - 1, Ts)

    print("KERNEL_OK")
</pallas_src>

<mosaic_0001>
module attributes {stable_mosaic.version = 11 : i64} {
  func.func @_controls_gamma_kernel(%arg0: i32, %arg1: memref<24x128xf32, #tpu.memory_space<vmem>>, %arg2: memref<128x8xf32, #tpu.memory_space<vmem>>, %arg3: memref<24x4xi32, #tpu.memory_space<vmem>>, %arg4: memref<1x1xf32, #tpu.memory_space<smem>>, %arg5: memref<24x8xf32, #tpu.memory_space<vmem>>, %arg6: memref<24x4xf32, #tpu.memory_space<vmem>>) attributes {dimension_semantics = [#tpu.dimension_semantics<parallel>], iteration_bounds = array<i64: 1>, scalar_prefetch = 0 : i64, scratch_operands = 0 : i64, tpu.core_type = #tpu.core_type<tc>, window_params = [{transform_indices = @transform_0, window_bounds = array<i64: 24, 128>}, {pipeline_mode = #tpu.pipeline_mode<synchronous>, transform_indices = @transform_1, window_bounds = array<i64: 128, 8>}, {transform_indices = @transform_2, window_bounds = array<i64: 24, 4>}, {transform_indices = @transform_3, window_bounds = array<i64: 1, 1>}, {transform_indices = @transform_4, window_bounds = array<i64: 24, 8>}, {transform_indices = @transform_5, window_bounds = array<i64: 24, 4>}]} {
    %c0 = arith.constant 0 : index
    %c0_0 = arith.constant 0 : index
    %0 = vector.load %arg1[%c0, %c0_0] : memref<24x128xf32, #tpu.memory_space<vmem>>, vector<24x128xf32>
    %c0_1 = arith.constant 0 : index
    %c0_2 = arith.constant 0 : index
    %1 = vector.load %arg2[%c0_1, %c0_2] : memref<128x8xf32, #tpu.memory_space<vmem>>, vector<128x8xf32>
    %cst = arith.constant dense<0.000000e+00> : vector<24x8xf32>
    %2 = tpu.matmul %0, %1, %cst {dimension_numbers = #tpu.dot_dimension_numbers<[1], [0], [0], [1], [0, 0, 1, 1], [], []>} : vector<24x128xf32>, vector<128x8xf32>, vector<24x8xf32> -> vector<24x8xf32>
    %c0_3 = arith.constant 0 : index
    %c0_4 = arith.constant 0 : index
    %3 = memref.load %arg4[%c0_3, %c0_4] : memref<1x1xf32, #tpu.memory_space<smem>>
    %4 = vector.broadcast %3 : f32 to vector<24x8xf32>
    %5 = arith.addf %2, %4 : vector<24x8xf32>
    %cst_5 = arith.constant 0.000000e+00 : f32
    %6 = vector.broadcast %cst_5 : f32 to vector<24x8xf32>
    %7 = arith.minimumf %5, %6 : vector<24x8xf32>
    %8 = math.absf %5 : vector<24x8xf32>
    %cst_6 = arith.constant 0.000000e+00 : f32
    %9 = vector.broadcast %cst_6 : f32 to vector<24x8xf32>
    %10 = arith.subf %9, %8 : vector<24x8xf32>
    %11 = math.exp %10 : vector<24x8xf32>
    %12 = math.log1p %11 : vector<24x8xf32>
    %13 = arith.subf %7, %12 : vector<24x8xf32>
    %14 = tpu.iota {dimensions = array<i32: 1>} : vector<1x8xi32>
    %c1_i32 = arith.constant 1 : i32
    %15 = vector.broadcast %c1_i32 : i32 to vector<1x8xi32>
    %16 = arith.andi %14, %15 : vector<1x8xi32>
    %c1_i32_7 = arith.constant 1 : i32
    %17 = vector.broadcast %c1_i32_7 : i32 to vector<1x8xi32>
    %18 = arith.cmpi eq, %16, %17 : vector<1x8xi32>
    %19 = arith.subf %13, %5 : vector<24x8xf32>
    %20 = vector.shape_cast %18 : vector<1x8xi1> to vector<1x8xi1>
    %21 = vector.broadcast %20 : vector<1x8xi1> to vector<24x8xi1>
    %22 = arith.select %21, %19, %13 : vector<24x8xi1>, vector<24x8xf32>
    %c0_8 = arith.constant 0 : index
    %c0_9 = arith.constant 0 : index
    %23 = vector.load %arg5[%c0_8, %c0_9] : memref<24x8xf32, #tpu.memory_space<vmem>>, vector<24x8xf32>
    tpu.vector_store %arg5[%c0_8, %c0_9], %22 {strides = array<i32>} : memref<24x8xf32, #tpu.memory_space<vmem>>, vector<24x8xf32>,
    %c0_10 = arith.constant 0 : index
    %c0_11 = arith.constant 0 : index
    %24 = vector.load %arg3[%c0_10, %c0_11] : memref<24x4xi32, #tpu.memory_space<vmem>>, vector<24x4xi32>
    %c0_i32 = arith.constant 0 : i32
    %25 = vector.broadcast %c0_i32 : i32 to vector<24x4xi32>
    %26 = arith.cmpi sge, %24, %25 : vector<24x4xi32>
    %27 = arith.extui %26 : vector<24x4xi1> to vector<24x4xi32>
    %28 = arith.sitofp %27 : vector<24x4xi32> to vector<24x4xf32>
    %c0_12 = arith.constant 0 : index
    %c0_13 = arith.constant 0 : index
    %29 = vector.load %arg6[%c0_12, %c0_13] : memref<24x4xf32, #tpu.memory_space<vmem>>, vector<24x4xf32>
    tpu.vector_store %arg6[%c0_12, %c0_13], %28 {strides = array<i32>} : memref<24x4xf32, #tpu.memory_space<vmem>>, vector<24x4xf32>,
    return
  }
  func.func @transform_0(%arg0: i32) -> (i32, i32) {
    %c0_i32 = arith.constant 0 : i32
    %c0_i32_0 = arith.constant 0 : i32
    return %arg0, %c0_i32 : i32, i32
  }
  func.func @transform_1(%arg0: i32) -> (i32, i32) {
    %c0_i32 = arith.constant 0 : i32
    %c0_i32_0 = arith.constant 0 : i32
    %c0_i32_1 = arith.constant 0 : i32
    return %c0_i32, %c0_i32_0 : i32, i32
  }
  func.func @transform_2(%arg0: i32) -> (i32, i32) {
    %c0_i32 = arith.constant 0 : i32
    %c0_i32_0 = arith.constant 0 : i32
    return %arg0, %c0_i32 : i32, i32
  }
  func.func @transform_3(%arg0: i32) -> (i32, i32) {
    %c0_i32 = arith.constant 0 : i32
    %c0_i32_0 = arith.constant 0 : i32
    %c0_i32_1 = arith.constant 0 : i32
    return %c0_i32, %c0_i32_0 : i32, i32
  }
  func.func @transform_4(%arg0: i32) -> (i32, i32) {
    %c0_i32 = arith.constant 0 : i32
    %c0_i32_0 = arith.constant 0 : i32
    return %arg0, %c0_i32 : i32, i32
  }
  func.func @transform_5(%arg0: i32) -> (i32, i32) {
    %c0_i32 = arith.constant 0 : i32
    %c0_i32_0 = arith.constant 0 : i32
    return %arg0, %c0_i32 : i32, i32
  }
}

</mosaic_0001>

<llo_original>
// kernel: neg.1
$region0: #{neg.1}
  #allocation2 [shape = 's32[1]{0}', space=sflag, size = 0x4, scoped, tag = 'scoped memory for neg.1']
  %s0 = inlined_call_operand.hbm [shape: f32[2,6,8], index: 0, kind: input, shape index: {}]
  %s1 = inlined_call_operand.vmem [shape: f32[2,6,8], index: 1, kind: output, shape index: {}]
  $region1: #{neg.1} parent=0
    #allocation0 [shape = 'u8[6144]{0}', space=vmem, size = 0x1800, scoped, tag = 'operand span for operand 0']
    #allocation1 [shape = 's32[1]{0}', space=sflag, size = 0x4, scoped, tag = 'scoped memory for neg.1']
    %2 = vsyncpa [#allocation1], 0
    %s4 = ssub.s32 192, 192
    %5 = vsyncadd [#allocation1], %s4
    %s6 = sshll.u32 [#allocation0], 4
    %s7 = int_to_ptr.vmem [resolvable:$true] %s6
    %12 = dma.hbm_to_vmem [thread:$0]  %s0, 192, %s7, [#allocation1], 32, 32, 2
    %13 = dma.done [#allocation1], 192
    %v14 = vld [vmem:[#allocation0] sm:$0x3]
    %15 = xla_tuple %v14
    %16 = xla_tuple %15
    %v17 = vxor.u32 %v14, 2147483648
    %18 = xla_tuple %v17
    %19 = vst [vmem:[%s1] sm:$0x3] %v17
    %s20 = scalar_lea.vmem [#allocation0], 2
    %v21 = vld [vmem:[%s20] sm:$0x3]
    %22 = xla_tuple %v21
    %23 = xla_tuple %22
    %v24 = vxor.u32 %v21, 2147483648
    %25 = xla_tuple %v24
    %s26 = scalar_lea.vmem %s1, 2
    %27 = vst [vmem:[%s26] sm:$0x3] %v24
    %s28 = scalar_lea.vmem [#allocation0], 4
    %v29 = vld [vmem:[%s28] sm:$0x3]
    %30 = xla_tuple %v29
    %31 = xla_tuple %30
    %v32 = vxor.u32 %v29, 2147483648
    %33 = xla_tuple %v32
    %s34 = scalar_lea.vmem %s1, 4
    %35 = vst [vmem:[%s34] sm:$0x3] %v32
    %s36 = scalar_lea.vmem [#allocation0], 6
    %v37 = vld [vmem:[%s36] sm:$0x3]
    %38 = xla_tuple %v37
    %39 = xla_tuple %38
    %v40 = vxor.u32 %v37, 2147483648
    %41 = xla_tuple %v40
    %s42 = scalar_lea.vmem %s1, 6
    %43 = vst [vmem:[%s42] sm:$0x3] %v40
    %s44 = scalar_lea.vmem [#allocation0], 8
    %v45 = vld [vmem:[%s44] sm:$0x3]
    %46 = xla_tuple %v45
    %47 = xla_tuple %46
    %v48 = vxor.u32 %v45, 2147483648
    %49 = xla_tuple %v48
    %s50 = scalar_lea.vmem %s1, 8
    %51 = vst [vmem:[%s50] sm:$0x3] %v48
    %s52 = scalar_lea.vmem [#allocation0], 10
    %v53 = vld [vmem:[%s52] sm:$0x3]
    %54 = xla_tuple %v53
    %55 = xla_tuple %54
    %v56 = vxor.u32 %v53, 2147483648
    %57 = xla_tuple %v56
    %s58 = scalar_lea.vmem %s1, 10
    %59 = vst [vmem:[%s58] sm:$0x3] %v56
    %60 = vsyncpa [#allocation1], 1

// kernel: reverse
$region0: #{reverse}
  %s0 = inlined_call_operand.vmem [shape: f32[8], index: 0, kind: input, shape index: {}]
  %s1 = inlined_call_operand.vmem [shape: f32[8], index: 1, kind: output, shape index: {}]
  %v2 = vlaneseq
  %v3 = vsub.s32 7, %v2
  %4 = vset.pattern.permute.xlu0 %v3
  $region1: #{reverse} parent=0
    #allocation0 [shape = 'u8[8192]{0}', space=vmem, size = 0x2000, scoped, tag = 'operand span for operand 0']
    #allocation1 [shape = 'u8[1024]{0}', space=vmem, size = 0x400, scoped, tag = 'packed  for operand 0']
    #allocation2 [shape = 'u8[4096]{0}', space=vmem, size = 0x1000, scoped, tag = 'operand span for operand 1']
    #allocation3 [shape = 'u8[512]{0}', space=vmem, size = 0x400, scoped, tag = 'packed  for operand 1']
    %s5 = scalar_lea.vmem [#allocation1], 1
    // Predicated region
    $region2: #{reverse} parent=1 // pred_check
      _
    $region3: #{reverse} parent=1 // pred_check_branch
      %7 = sbr.rel (0) target = $region5
    $region4: #{reverse} parent=1 // pred_region
      // Predicated region
      $region6: #{reverse} parent=4 // pred_check
        _
      $region7: #{reverse} parent=4 // pred_check_branch
        %9 = sbr.rel target = $region9
      $region8: #{reverse} parent=4 // pred_region
        // Predicated region
        $region21: #{reverse} parent=8 // pred_check
          _
        $region22: #{reverse} parent=8 // pred_check_branch
          %24 = sbr.rel (0) target = $region24
        $region23: #{reverse} parent=8 // pred_region
          loop: start=0, step=1, limit=1
          $region25: #{reverse} parent=23 // loop_pre_header
            _
          $region26: #{reverse} parent=23 // loop_header
            %s27 = sphi 0, %s31
            %p28 = scmp.ge.s32.totalorder %s27, 1
            %s32 = sphi %s0, %s0
            %s33 = sphi %s5, %s5
          $region27: #{reverse} parent=23 // loop_header_branch
            %30 = sbr.rel (%p28) target = $region31
          $region28: #{reverse} parent=23 // loop_body
            %v34 = vld [vmem:[%s32] sm:$0x1]
            %35 = vst [vmem:[%s33] sm:$0x1] %v34
          $region29: #{reverse} parent=23 // loop_footer
            %s31 = sadd.s32 1, %s27
          $region30: #{reverse} parent=23 // loop_footer_branch
            %26 = sbr.rel target = $region26
          $region31: #{reverse} parent=23 // loop_exit
            _
        $region24: #{reverse} parent=8 // pred_fallthru
          _
      $region9: #{reverse} parent=4 // pred_fallthru
        _
      // Predicated region
      $region10: #{reverse} parent=4 // pred_check
        _
      $region11: #{reverse} parent=4 // pred_check_branch
        %11 = sbr.rel (0) target = $region13
      $region12: #{reverse} parent=4 // pred_region
        loop: start=0, step=1, limit=1
        $region14: #{reverse} parent=12 // loop_pre_header
          _
        $region15: #{reverse} parent=12 // loop_header
          %s14 = sphi 0, %s18
          %p15 = scmp.ge.s32.totalorder %s14, 1
          %s19 = sphi %s0, %s0
          %s20 = sphi %s5, %s5
        $region16: #{reverse} parent=12 // loop_header_branch
          %17 = sbr.rel (%p15) target = $region20
        $region17: #{reverse} parent=12 // loop_body
          %v21 = vld [vmem:[%s19] sm:$0x1]
          %22 = vst [vmem:[%s20] sm:$0x1] %v21
        $region18: #{reverse} parent=12 // loop_footer
          %s18 = sadd.s32 1, %s14
        $region19: #{reverse} parent=12 // loop_footer_branch
          %13 = sbr.rel target = $region15
        $region20: #{reverse} parent=12 // loop_exit
          _
      $region13: #{reverse} parent=4 // pred_fallthru
        _
    $region5: #{reverse} parent=1 // pred_fallthru
      _
    %36 = vnop
    %s38 = sshllo.u32 0, 1
    %s39 = scalar_lea.vmem [#allocation1], 1
    %v40 = vld [vmem:[%s39] sm:%s38]
    %s41 = scalar_lea.vmem [#allocation0], 8
    %42 = vst [vmem:[%s41] sm:%s38] %v40
    %v43 = vld [vmem:[#allocation1] sm:%s38]
    %44 = vst [vmem:[#allocation0] sm:%s38] %v43
    %s45 = scalar_lea.vmem [#allocation0], 7
    %v46 = vld [vmem:[%s45] ss:$-1 sm:$0xff]
    %v47 = vrot.slane %v46, 7
    %48 = vperm.xlu0 %4, %v47
    %v49 = vpop.permute.xlu0 %48
    %50 = vst [vmem:[#allocation2] sm:$0xff] %v49
    %s51 = scalar_lea.vmem [#allocation0], 8
    %s52 = scalar_lea.vmem %s51, 7 [#allocation0]
    %v53 = vld [vmem:[%s52] ss:$-1 sm:$0xff]
    %v54 = vrot.slane %v53, 7
    %55 = vperm.xlu0 %4, %v54
    %v56 = vpop.permute.xlu0 %55
    %v57 = vlaneseq
    %v58 = vshrl.u32 %v57, 7
    %vm59 = vcmp.lt.s32.totalorder %v58, 1
    %60 = vst.msk [vmem:[#allocation2] sm:$0xff] %vm59, %v56
    %s62 = sshllo.u32 0, 1
    %v64 = vld [vmem:[#allocation2] sm:%s62]
    %s65 = sshllo.u32 0, 1
    %66 = vst [vmem:[#allocation3] sm:%s65] %v64
    // Predicated region
    $region32: #{reverse} parent=1 // pred_check
      _
    $region33: #{reverse} parent=1 // pred_check_branch
      %68 = sbr.rel (0) target = $region35
    $region34: #{reverse} parent=1 // pred_region
      // Predicated region
      $region36: #{reverse} parent=34 // pred_check
        _
      $region37: #{reverse} parent=34 // pred_check_branch
        %70 = sbr.rel target = $region39
      $region38: #{reverse} parent=34 // pred_region
        // Predicated region
        $region51: #{reverse} parent=38 // pred_check
          _
        $region52: #{reverse} parent=38 // pred_check_branch
          %85 = sbr.rel (0) target = $region54
        $region53: #{reverse} parent=38 // pred_region
          loop: start=0, step=1, limit=1
          $region55: #{reverse} parent=53 // loop_pre_header
            _
          $region56: #{reverse} parent=53 // loop_header
            %s88 = sphi 0, %s92
            %p89 = scmp.ge.s32.totalorder %s88, 1
            %s93 = sphi [#allocation3], [#allocation3]
            %s94 = sphi %s1, %s1
          $region57: #{reverse} parent=53 // loop_header_branch
            %91 = sbr.rel (%p89) target = $region61
          $region58: #{reverse} parent=53 // loop_body
            %v95 = vld [vmem:[%s93] sm:$0x1]
            %96 = vst [vmem:[%s94] sm:$0x1] %v95
          $region59: #{reverse} parent=53 // loop_footer
            %s92 = sadd.s32 1, %s88
          $region60: #{reverse} parent=53 // loop_footer_branch
            %87 = sbr.rel target = $region56
          $region61: #{reverse} parent=53 // loop_exit
            _
        $region54: #{reverse} parent=38 // pred_fallthru
          _
      $region39: #{reverse} parent=34 // pred_fallthru
        _
      // Predicated region
      $region40: #{reverse} parent=34 // pred_check
        _
      $region41: #{reverse} parent=34 // pred_check_branch
        %72 = sbr.rel (0) target = $region43
      $region42: #{reverse} parent=34 // pred_region
        loop: start=0, step=1, limit=1
        $region44: #{reverse} parent=42 // loop_pre_header
          _
        $region45: #{reverse} parent=42 // loop_header
          %s75 = sphi 0, %s79
          %p76 = scmp.ge.s32.totalorder %s75, 1
          %s80 = sphi [#allocation3], [#allocation3]
          %s81 = sphi %s1, %s1
        $region46: #{reverse} parent=42 // loop_header_branch
          %78 = sbr.rel (%p76) target = $region50
        $region47: #{reverse} parent=42 // loop_body
          %v82 = vld [vmem:[%s80] sm:$0x1]
          %83 = vst [vmem:[%s81] sm:$0x1] %v82
        $region48: #{reverse} parent=42 // loop_footer
          %s79 = sadd.s32 1, %s75
        $region49: #{reverse} parent=42 // loop_footer_branch
          %74 = sbr.rel target = $region45
        $region50: #{reverse} parent=42 // loop_exit
          _
      $region43: #{reverse} parent=34 // pred_fallthru
        _
    $region35: #{reverse} parent=1 // pred_fallthru
      _
    %97 = vnop

// kernel: fb_controls_forward.1
$region0: #{fb_controls_forward.1}
  #allocation0 [shape = 'u32[]', space=smem, size = 0x4, offset = 0x4, fixed_abs, tag = 'smem constant byte address 0x4 - core index']
  #allocation1 [shape = 'u32[144,128]{1,0:T(1,128)}', space=vmem, size = 0x12000, scoped, tag = 'internal scratch']
  #allocation2 [shape = 'f32[1,1]{1,0:T(1,128)S(6)}', space=smem, size = 0x200, scoped, tag = 'scoped memory for fb_controls_forward.1']
  %s0 = inlined_call_operand.vmem [shape: f32[24,128], index: 0, kind: input, shape index: {}]
  %s1 = inlined_call_operand.vmem [shape: f32[128,8], index: 1, kind: input, shape index: {}]
  %s2 = inlined_call_operand.vmem [shape: s32[24,4], index: 2, kind: input, shape index: {}]
  %s3 = inlined_call_operand.<no memory space> [shape: f32[1,1], index: 3, kind: input, shape index: {}]
  %s4 = inlined_call_operand.vmem [shape: f32[24,8], index: 4, kind: output, shape index: {0}]
  %s5 = inlined_call_operand.vmem [shape: f32[24,4], index: 5, kind: output, shape index: {1}]
  %6 = xla_tuple %s4, %s5
  %s7 = sld [smem:[#allocation0]]
  $region34: #{fb_controls_forward.1} parent=0
    _
  %s9 = ssub.s32 1, %s7
  %s10 = scalar_select 0, %s9, %s7
  %11 = sst [smem:[#allocation2]] %s3
  // Predicated region
  $region2: #{fb_controls_forward.1} parent=0 // pred_check
    _
  $region3: #{fb_controls_forward.1} parent=0 // pred_check_branch
    %13 = sbr.rel (0) target = $region5
  $region4: #{fb_controls_forward.1} parent=0 // pred_region
    _
  $region5: #{fb_controls_forward.1} parent=0 // pred_fallthru
    _
  // Predicated region
  $region6: #{fb_controls_forward.1} parent=0 // pred_check
    _
  $region7: #{fb_controls_forward.1} parent=0 // pred_check_branch
    %15 = sbr.rel (0) target = $region9
  $region8: #{fb_controls_forward.1} parent=0 // pred_region
    _
  $region9: #{fb_controls_forward.1} parent=0 // pred_fallthru
    _
  // Predicated region
  $region10: #{fb_controls_forward.1} parent=0 // pred_check
    _
  $region11: #{fb_controls_forward.1} parent=0 // pred_check_branch
    %17 = sbr.rel (0) target = $region13
  $region12: #{fb_controls_forward.1} parent=0 // pred_region
    _
  $region13: #{fb_controls_forward.1} parent=0 // pred_fallthru
    _
  // Predicated region
  $region14: #{fb_controls_forward.1} parent=0 // pred_check
    _
  $region15: #{fb_controls_forward.1} parent=0 // pred_check_branch
    %19 = sbr.rel (0) target = $region17
  $region16: #{fb_controls_forward.1} parent=0 // pred_region
    _
  $region17: #{fb_controls_forward.1} parent=0 // pred_fallthru
    _
  %v20 = vld [vmem:[%s0] sm:$0xff]
  %v21 = vld [vmem:[%s0 + $0x8] sm:$0xff]
  %v22 = vld [vmem:[%s0 + $0x10] sm:$0xff]
  %v23 = vld [vmem:[%s1] sm:$0xff]
  %v24 = vld [vmem:[%s1 + $0x8] sm:$0xff]
  %v25 = vld [vmem:[%s1 + $0x10] sm:$0xff]
  %v26 = vld [vmem:[%s1 + $0x18] sm:$0xff]
  %v27 = vld [vmem:[%s1 + $0x20] sm:$0xff]
  %v28 = vld [vmem:[%s1 + $0x28] sm:$0xff]
  %v29 = vld [vmem:[%s1 + $0x30] sm:$0xff]
  %v30 = vld [vmem:[%s1 + $0x38] sm:$0xff]
  %v31 = vld [vmem:[%s1 + $0x40] sm:$0xff]
  %v32 = vld [vmem:[%s1 + $0x48] sm:$0xff]
  %v33 = vld [vmem:[%s1 + $0x50] sm:$0xff]
  %v34 = vld [vmem:[%s1 + $0x58] sm:$0xff]
  %v35 = vld [vmem:[%s1 + $0x60] sm:$0xff]
  %v36 = vld [vmem:[%s1 + $0x68] sm:$0xff]
  %v37 = vld [vmem:[%s1 + $0x70] sm:$0xff]
  %v38 = vld [vmem:[%s1 + $0x78] sm:$0xff]
  %s39 = sld [smem:[#allocation2]]
  %v40 = vstv %s39
  %41 = vmatprep.subr.mxu0 0.0
  %42 = vmatpush1.msra.mxu0 %v23
  %43 = vmatprep.subr.mxu0 0.0
  %44 = vmatpush1.msra.mxu0 %v24
  %45 = vmatprep.subr.mxu0 0.0
  %46 = vmatpush1.msra.mxu0 %v25
  %47 = vmatprep.subr.mxu0 0.0
  %48 = vmatpush1.msra.mxu0 %v26
  %49 = vmatprep.subr.mxu0 0.0
  %50 = vmatpush1.msra.mxu0 %v27
  %51 = vmatprep.subr.mxu0 0.0
  %52 = vmatpush1.msra.mxu0 %v28
  %53 = vmatprep.subr.mxu0 0.0
  %54 = vmatpush1.msra.mxu0 %v29
  %55 = vmatprep.subr.mxu0 0.0
  %56 = vmatpush1.msra.mxu0 %v30
  %57 = vmatprep.subr.mxu0 0.0
  %58 = vmatpush1.msra.mxu0 %v31
  %59 = vmatprep.subr.mxu0 0.0
  %60 = vmatpush1.msra.mxu0 %v32
  %61 = vmatprep.subr.mxu0 0.0
  %62 = vmatpush1.msra.mxu0 %v33
  %63 = vmatprep.subr.mxu0 0.0
  %64 = vmatpush1.msra.mxu0 %v34
  %65 = vmatprep.subr.mxu0 0.0
  %66 = vmatpush1.msra.mxu0 %v35
  %67 = vmatprep.subr.mxu0 0.0
  %68 = vmatpush1.msra.mxu0 %v36
  %69 = vmatprep.subr.mxu0 0.0
  %70 = vmatpush1.msra.mxu0 %v37
  %71 = vmatprep.subr.mxu0 0.0
  %72 = vmatpush1.msra.mxu0 %v38
  %73 = vmatprep.subr.mxu0 0.0
  %74 = vmatpush1.msra.mxu0 0.0
  %75 = vmatprep.subr.mxu0 0.0
  %76 = vmatpush1.msra.mxu0 0.0
  %77 = vmatprep.subr.mxu0 0.0
  %78 = vmatpush1.msra.mxu0 0.0
  %79 = vmatprep.subr.mxu0 0.0
  %80 = vmatpush1.msra.mxu0 0.0
  %81 = vmatprep.subr.mxu0 0.0
  %82 = vmatpush1.msra.mxu0 0.0
  %83 = vmatprep.subr.mxu0 0.0
  %84 = vmatpush1.msra.mxu0 0.0
  %85 = vmatprep.subr.mxu0 0.0
  %86 = vmatpush1.msra.mxu0 0.0
  %87 = vmatprep.subr.mxu0 0.0
  %88 = vmatpush1.msra.mxu0 0.0
  %89 = vmatprep.subr.mxu0 0.0
  %90 = vmatpush1.msra.mxu0 0.0
  %91 = vmatprep.subr.mxu0 0.0
  %92 = vmatpush1.msra.mxu0 0.0
  %93 = vmatprep.subr.mxu0 0.0
  %94 = vmatpush1.msra.mxu0 0.0
  %95 = vmatprep.subr.mxu0 0.0
  %96 = vmatpush1.msra.mxu0 0.0
  %97 = vmatprep.subr.mxu0 0.0
  %98 = vmatpush1.msra.mxu0 0.0
  %99 = vmatprep.subr.mxu0 0.0
  %100 = vmatpush1.msra.mxu0 0.0
  %101 = vmatprep.subr.mxu0 0.0
  %102 = vmatpush1.msra.mxu0 0.0
  %103 = vmatprep.subr.mxu0 0.0
  %104 = vmatpush1.msra.mxu0 0.0
  %105 = vmatprep.mubr.f32.mxu0 0.0
  %106 = vmatmul.mubr.f32.gmra.mrb[0].mxu0 %v20
  %v107 = vpop.f32.mrb[0].mxu0
  %v108 = vadd.f32 %v40, %v107
  %v109 = vpop.f32.mrb[0].mxu0
  %110 = vmatprep.mubr.f32.mxu0 0.0
  %111 = vmatmul.mubr.f32.gmra.mrb[0].mxu0 %v21
  %v112 = vpop.f32.mrb[0].mxu0
  %v113 = vadd.f32 %v40, %v112
  %v114 = vpop.f32.mrb[0].mxu0
  %115 = vmatprep.mubr.f32.mxu0 0.0
  %116 = vmatmul.mubr.f32.gmra.mrb[0].mxu0 %v22
  %v117 = vpop.f32.mrb[0].mxu0
  %v118 = vadd.f32 %v40, %v117
  %v119 = vpop.f32.mrb[0].mxu0
  %120 = vdwg.mxu0
  %v121 = vmin.f32 %v108, 0.0
  %v122 = vmin.f32 %v113, 0.0
  %v123 = vmin.f32 %v118, 0.0
  %v124 = vand.u32 2147483647, %v108
  %v125 = vand.u32 2147483647, %v113
  %v126 = vand.u32 2147483647, %v118
  %v127 = vsub.f32 0.0, %v124
  %v128 = vsub.f32 0.0, %v125
  %v129 = vsub.f32 0.0, %v126
  %v130 = vmul.f32 %v127, 1.442695
  %v131 = vpow.pop %v130
  %v132 = vmul.f32 %v128, 1.442695
  %v133 = vpow.pop %v132
  %v134 = vmul.f32 %v129, 1.442695
  %v135 = vpow.pop %v134
  %v136 = vadd.f32 %v131, 1.0
  %v137 = vlog2.pop %v136
  %v138 = vmul.f32 %v137, 0.6931472
  %v139 = vmul.f32 -0.5, %v131
  %v140 = vadd.f32 %v139, 1.0
  %v141 = vmul.f32 %v140, %v131
  %v142 = vand.u32 2147483647, %v131
  %vm143 = vcmp.lt.f32.partialorder %v142, 0.0004427343
  %v144 = vsel %vm143, %v141, %v138
  %v145 = vadd.f32 %v133, 1.0
  %v146 = vlog2.pop %v145
  %v147 = vmul.f32 %v146, 0.6931472
  %v148 = vmul.f32 -0.5, %v133
  %v149 = vadd.f32 %v148, 1.0
  %v150 = vmul.f32 %v149, %v133
  %v151 = vand.u32 2147483647, %v133
  %vm152 = vcmp.lt.f32.partialorder %v151, 0.0004427343
  %v153 = vsel %vm152, %v150, %v147
  %v154 = vadd.f32 %v135, 1.0
  %v155 = vlog2.pop %v154
  %v156 = vmul.f32 %v155, 0.6931472
  %v157 = vmul.f32 -0.5, %v135
  %v158 = vadd.f32 %v157, 1.0
  %v159 = vmul.f32 %v158, %v135
  %v160 = vand.u32 2147483647, %v135
  %vm161 = vcmp.lt.f32.partialorder %v160, 0.0004427343
  %v162 = vsel %vm161, %v159, %v156
  %v163 = vsub.f32 %v121, %v144
  %v164 = vsub.f32 %v122, %v153
  %v165 = vsub.f32 %v123, %v162
  %v166 = vlaneseq
  %v167 = vand.u32 %v166, 127
  %v168 = vand.u32 %v167, 1
  %vm169 = vcmp.eq.s32.totalorder %v168, 1
  %v170 = vsub.f32 %v163, %v108
  %v171 = vsub.f32 %v164, %v113
  %v172 = vsub.f32 %v165, %v118
  %v173 = vsel %vm169, 1, 0
  %vm174 = vcmp.eq.s32.totalorder %v173, 1
  %v175 = vsel %vm174, %v170, %v163
  %v176 = vsel %vm174, %v171, %v164
  %v177 = vsel %vm174, %v172, %v165
  %vm178 = vcmask 64512
  %179 = vst.msk [vmem:[%s4] sm:$0xff] %vm178, %v175
  %180 = vst.msk [vmem:[%s4 + $0x8] sm:$0xff] %vm178, %v176
  %181 = vst.msk [vmem:[%s4 + $0x10] sm:$0xff] %vm178, %v177
  %v182 = vld [vmem:[%s2] sm:$0xff]
  %v183 = vld [vmem:[%s2 + $0x8] sm:$0xff]
  %v184 = vld [vmem:[%s2 + $0x10] sm:$0xff]
  %vm185 = vcmp.ge.s32.totalorder %v182, 0
  %vm186 = vcmp.ge.s32.totalorder %v183, 0
  %vm187 = vcmp.ge.s32.totalorder %v184, 0
  %v188 = vsel %vm185, 1, 0
  %v189 = vsel %vm186, 1, 0
  %v190 = vsel %vm187, 1, 0
  %v191 = vcvt.s32.f32 %v188
  %v192 = vcvt.s32.f32 %v189
  %v193 = vcvt.s32.f32 %v190
  %vm194 = vcmask 31744
  %195 = vst.msk [vmem:[%s5] sm:$0xff] %vm194, %v191
  %196 = vst.msk [vmem:[%s5 + $0x8] sm:$0xff] %vm194, %v192
  %197 = vst.msk [vmem:[%s5 + $0x10] sm:$0xff] %vm194, %v193
  // Predicated region
  $region18: #{fb_controls_forward.1} parent=0 // pred_check
    _
  $region19: #{fb_controls_forward.1} parent=0 // pred_check_branch
    %199 = sbr.rel (0) target = $region21
  $region20: #{fb_controls_forward.1} parent=0 // pred_region
    _
  $region21: #{fb_controls_forward.1} parent=0 // pred_fallthru
    _
  // Predicated region
  $region22: #{fb_controls_forward.1} parent=0 // pred_check
    _
  $region23: #{fb_controls_forward.1} parent=0 // pred_check_branch
    %201 = sbr.rel (0) target = $region25
  $region24: #{fb_controls_forward.1} parent=0 // pred_region
    _
  $region25: #{fb_controls_forward.1} parent=0 // pred_fallthru
    _
  // Predicated region
  $region26: #{fb_controls_forward.1} parent=0 // pred_check
    _
  $region27: #{fb_controls_forward.1} parent=0 // pred_check_branch
    %203 = sbr.rel (0) target = $region29
  $region28: #{fb_controls_forward.1} parent=0 // pred_region
    _
  $region29: #{fb_controls_forward.1} parent=0 // pred_fallthru
    _
  // Predicated region
  $region30: #{fb_controls_forward.1} parent=0 // pred_check
    _
  $region31: #{fb_controls_forward.1} parent=0 // pred_check_branch
    %205 = sbr.rel (0) target = $region33
  $region32: #{fb_controls_forward.1} parent=0 // pred_region
    _
  $region33: #{fb_controls_forward.1} parent=0 // pred_fallthru
    _

</llo_original>
